<compile_context>
chip_gen: v5e
topology: v5e:2x2
jax: 0.10.0
libtpu: 0.0.40
codegen_flags: <defaults>
</compile_context>

<pallas_src>
import math

import jax
import jax.numpy as jnp
from jax.experimental import pallas as pl
from jax.experimental.pallas import tpu as pltpu


# ---------------------------------------------------------------------------
# Pallas kernel: fused  out = swish( one_hot(t) @ PE @ W + b )
# ---------------------------------------------------------------------------
def _time_features_kernel(t_ref, pe_ref, w_ref, b_ref, o_ref):
    """One (tm, tn) output tile.

    t_ref  : VMEM [tm, 1]       int32  (timestep indices for this batch tile)
    pe_ref : VMEM [TIMES, Din]  f32    (whole positional-encoding table, resident)
    w_ref  : VMEM [Din, tn]     f32    (column tile of W = torch weight.T)
    b_ref  : VMEM [1, tn]       f32
    o_ref  : VMEM [tm, tn]      f32
    """
    tm = o_ref.shape[0]
    times = pe_ref.shape[0]

    # One-hot gather on the MXU: (tm, TIMES) @ (TIMES, Din) -> (tm, Din).
    col = jax.lax.broadcasted_iota(jnp.int32, (tm, times), 1)
    one_hot = (t_ref[...] == col).astype(jnp.float32)          # broadcast (tm,1) vs (tm,TIMES)
    x = jnp.dot(one_hot, pe_ref[...], preferred_element_type=jnp.float32)

    # Linear + bias + swish, written straight to the output block.
    z = jnp.dot(x, w_ref[...], preferred_element_type=jnp.float32)
    z = z + b_ref[...]                                          # bias broadcast over rows
    o_ref[...] = (z * jax.nn.sigmoid(z)).astype(o_ref.dtype)    # swish


def time_features_pallas(t, pos_embedding, w, b, *, tm=None, tn=None):
    """t: int32 [B]; pos_embedding: [TIMES, Din] f32; w: [Din, Dout] f32; b: [1, Dout] f32."""
    times, d_in = pos_embedding.shape
    d_out = w.shape[1]
    B = t.shape[0]

    if tm is None:
        tm = B if B <= 128 else 128
    if tn is None:
        tn = d_out                       # lane-dense full-width output store
    assert B % tm == 0
    assert tm == B or tm % 8 == 0
    assert d_out % tn == 0 and (tn % 128 == 0 or tn == d_out)

    # Grid: output-column axis outer, batch axis inner -> each W column tile stays
    # VMEM-resident across all batch tiles (W is read from HBM exactly once).
    grid = (d_out // tn, B // tm)

    t2d = t.reshape(B, 1).astype(jnp.int32)

    cost = pl.CostEstimate(
        flops=2 * B * times * d_in + 2 * B * d_in * d_out,
        transcendentals=B * d_out,
        bytes_accessed=4 * (B + times * d_in + d_in * d_out + d_out + B * d_out),
    )

    # VMEM budget estimate (double-buffered inputs/outputs) with headroom; cap at the
    # v7x per-TensorCore physical VMEM so the same sizing is safe on all generations.
    est_bytes = 4 * (times * d_in + 2 * d_in * tn + 2 * tn + 2 * tm * tn) + 4 * 2 * tm
    vmem_limit = int(min(64 * 1024 * 1024, max(2 * est_bytes, 16 * 1024 * 1024)))

    return pl.pallas_call(
        _time_features_kernel,
        out_shape=jax.ShapeDtypeStruct((B, d_out), pos_embedding.dtype),
        grid_spec=pltpu.PrefetchScalarGridSpec(
            num_scalar_prefetch=0,
            grid=grid,
            in_specs=[
                pl.BlockSpec((tm, 1), lambda j, i: (i, 0)),          # timestep indices
                pl.BlockSpec((times, d_in), lambda j, i: (0, 0)),    # full PE table, resident
                pl.BlockSpec((d_in, tn), lambda j, i: (0, j)),       # W column tile
                pl.BlockSpec((1, tn), lambda j, i: (0, j)),          # bias tile
            ],
            out_specs=pl.BlockSpec((tm, tn), lambda j, i: (i, j)),
        ),
        compiler_params=pltpu.CompilerParams(
            dimension_semantics=("parallel", "parallel"),
            vmem_limit_bytes=vmem_limit,
        ),
        cost_estimate=cost,
    )(t2d, pos_embedding, w, b)


# ---------------------------------------------------------------------------
# Module-equivalent parameter construction + reference (plain JAX)
# ---------------------------------------------------------------------------
def make_positional_encoding(d_model, embeddings):
    # Matches the torch PositionalEncoding buffer construction.
    den = jnp.exp(-jnp.arange(0, d_model, 2, dtype=jnp.float32)
                  * math.log(10000.0) / d_model)
    pos = jnp.arange(0, embeddings, dtype=jnp.float32).reshape(embeddings, 1)
    pe = jnp.zeros((embeddings, d_model), dtype=jnp.float32)
    pe = pe.at[:, 0::2].set(jnp.sin(pos * den))
    pe = pe.at[:, 1::2].set(jnp.cos(pos * den))
    return pe


def init_time_features_params(key, times, feature_size):
    pos_embedding = make_positional_encoding(feature_size, times)
    # Deterministic init mimicking torch.nn.Linear default (uniform +-1/sqrt(fan_in)).
    kw, kb = jax.random.split(key)
    bound = 1.0 / math.sqrt(feature_size)
    w = jax.random.uniform(kw, (feature_size, feature_size),
                           minval=-bound, maxval=bound, dtype=jnp.float32)  # [Din, Dout]
    b = jax.random.uniform(kb, (1, feature_size),
                           minval=-bound, maxval=bound, dtype=jnp.float32)
    return dict(pos_embedding=pos_embedding, w=w, b=b)


def time_features_forward(params, t):
    """t: int32 [B] -> f32 [B, feature_size]; fully fused Pallas path."""
    return time_features_pallas(t, params["pos_embedding"], params["w"], params["b"])


def time_features_reference(params, t):
    emb = jnp.take(params["pos_embedding"], t, axis=0)
    z = emb @ params["w"] + params["b"]
    return z * jax.nn.sigmoid(z)


if __name__ == "__main__":
    TIMES = 64          # small "times" vocabulary
    FEATURE_SIZE = 256  # module default feature size (lane-aligned)
    BATCH = 8

    key = jax.random.PRNGKey(0)
    kparam, kt = jax.random.split(key)

    params = init_time_features_params(kparam, TIMES, FEATURE_SIZE)
    t = jax.random.randint(kt, (BATCH,), 0, TIMES, dtype=jnp.int32)

    out = jax.block_until_ready(time_features_forward(params, t))
    ref = time_features_reference(params, t)

    assert out.shape == (BATCH, FEATURE_SIZE)
    assert jnp.allclose(out, ref, atol=1e-5, rtol=1e-5)

    print("KERNEL_OK")
</pallas_src>

<mosaic_0001>
module attributes {stable_mosaic.version = 11 : i64} {
  func.func @_time_features_kernel(%arg0: i32, %arg1: i32, %arg2: memref<8x1xi32, #tpu.memory_space<vmem>>, %arg3: memref<64x256xf32, #tpu.memory_space<vmem>>, %arg4: memref<256x256xf32, #tpu.memory_space<vmem>>, %arg5: memref<1x256xf32, #tpu.memory_space<vmem>>, %arg6: memref<8x256xf32, #tpu.memory_space<vmem>>) attributes {dimension_semantics = [#tpu.dimension_semantics<parallel>, #tpu.dimension_semantics<parallel>], iteration_bounds = array<i64: 1, 1>, scalar_prefetch = 0 : i64, scratch_operands = 0 : i64, tpu.core_type = #tpu.core_type<tc>, window_params = [{transform_indices = @transform_0, window_bounds = array<i64: 8, 1>}, {pipeline_mode = #tpu.pipeline_mode<synchronous>, transform_indices = @transform_1, window_bounds = array<i64: 64, 256>}, {transform_indices = @transform_2, window_bounds = array<i64: 256, 256>}, {transform_indices = @transform_3, window_bounds = array<i64: 1, 256>}, {transform_indices = @transform_4, window_bounds = array<i64: 8, 256>}]} {
    %0 = tpu.iota {dimensions = array<i32: 1>} : vector<8x64xi32>
    %c0 = arith.constant 0 : index
    %c0_0 = arith.constant 0 : index
    %1 = vector.load %arg2[%c0, %c0_0] : memref<8x1xi32, #tpu.memory_space<vmem>>, vector<8x1xi32>
    %2 = vector.broadcast %1 : vector<8x1xi32> to vector<8x64xi32>
    %3 = arith.cmpi eq, %2, %0 : vector<8x64xi32>
    %4 = arith.extui %3 : vector<8x64xi1> to vector<8x64xi32>
    %5 = arith.sitofp %4 : vector<8x64xi32> to vector<8x64xf32>
    %c0_1 = arith.constant 0 : index
    %c0_2 = arith.constant 0 : index
    %6 = vector.load %arg3[%c0_1, %c0_2] : memref<64x256xf32, #tpu.memory_space<vmem>>, vector<64x256xf32>
    %cst = arith.constant dense<0.000000e+00> : vector<8x256xf32>
    %7 = tpu.matmul %5, %6, %cst {dimension_numbers = #tpu.dot_dimension_numbers<[1], [0], [0], [1], [0, 0, 1, 1], [], []>} : vector<8x64xf32>, vector<64x256xf32>, vector<8x256xf32> -> vector<8x256xf32>
    %c0_3 = arith.constant 0 : index
    %c0_4 = arith.constant 0 : index
    %8 = vector.load %arg4[%c0_3, %c0_4] : memref<256x256xf32, #tpu.memory_space<vmem>>, vector<256x256xf32>
    %cst_5 = arith.constant dense<0.000000e+00> : vector<8x256xf32>
    %9 = tpu.matmul %7, %8, %cst_5 {dimension_numbers = #tpu.dot_dimension_numbers<[1], [0], [0], [1], [0, 0, 1, 1], [], []>} : vector<8x256xf32>, vector<256x256xf32>, vector<8x256xf32> -> vector<8x256xf32>
    %c0_6 = arith.constant 0 : index
    %c0_7 = arith.constant 0 : index
    %10 = vector.load %arg5[%c0_6, %c0_7] : memref<1x256xf32, #tpu.memory_space<vmem>>, vector<1x256xf32>
    %11 = vector.broadcast %10 : vector<1x256xf32> to vector<8x256xf32>
    %12 = arith.addf %9, %11 : vector<8x256xf32>
    %13 = arith.negf %12 : vector<8x256xf32>
    %14 = math.exp %13 : vector<8x256xf32>
    %cst_8 = arith.constant 1.000000e+00 : f32
    %15 = vector.broadcast %cst_8 : f32 to vector<8x256xf32>
    %16 = arith.addf %15, %14 : vector<8x256xf32>
    %17 = arith.divf %15, %16 : vector<8x256xf32>
    %18 = arith.mulf %12, %17 : vector<8x256xf32>
    %c0_9 = arith.constant 0 : index
    %c0_10 = arith.constant 0 : index
    %19 = vector.load %arg6[%c0_9, %c0_10] : memref<8x256xf32, #tpu.memory_space<vmem>>, vector<8x256xf32>
    tpu.vector_store %arg6[%c0_9, %c0_10], %18 {strides = array<i32>} : memref<8x256xf32, #tpu.memory_space<vmem>>, vector<8x256xf32>,
    return
  }
  func.func @transform_0(%arg0: i32, %arg1: i32) -> (i32, i32) {
    %c0_i32 = arith.constant 0 : i32
    %c0_i32_0 = arith.constant 0 : i32
    return %arg1, %c0_i32 : i32, i32
  }
  func.func @transform_1(%arg0: i32, %arg1: i32) -> (i32, i32) {
    %c0_i32 = arith.constant 0 : i32
    %c0_i32_0 = arith.constant 0 : i32
    %c0_i32_1 = arith.constant 0 : i32
    return %c0_i32, %c0_i32_0 : i32, i32
  }
  func.func @transform_2(%arg0: i32, %arg1: i32) -> (i32, i32) {
    %c0_i32 = arith.constant 0 : i32
    %c0_i32_0 = arith.constant 0 : i32
    return %c0_i32, %arg0 : i32, i32
  }
  func.func @transform_3(%arg0: i32, %arg1: i32) -> (i32, i32) {
    %c0_i32 = arith.constant 0 : i32
    %c0_i32_0 = arith.constant 0 : i32
    return %c0_i32, %arg0 : i32, i32
  }
  func.func @transform_4(%arg0: i32, %arg1: i32) -> (i32, i32) {
    %c0_i32 = arith.constant 0 : i32
    return %arg1, %arg0 : i32, i32
  }
}

</mosaic_0001>

<llo_original>
// kernel: tpu_custom_call.1
$region0: #{tpu_custom_call.1}
  #allocation0 [shape = 'u32[]', space=smem, size = 0x4, offset = 0x4, fixed_abs, tag = 'smem constant byte address 0x4 - core index']
  #allocation1 [shape = 'u32[72,128]{1,0:T(1,128)}', space=vmem, size = 0x9000, scoped, tag = 'internal scratch']
  %s0 = inlined_call_operand.vmem [shape: s32[8,1], index: 0, kind: input, shape index: {}]
  %s1 = inlined_call_operand.hbm [shape: f32[64,256], index: 1, kind: input, shape index: {}]
  %s2 = inlined_call_operand.hbm [shape: f32[256,256], index: 2, kind: input, shape index: {}]
  %s3 = inlined_call_operand.vmem [shape: f32[1,256], index: 3, kind: input, shape index: {}]
  %s4 = inlined_call_operand.hbm [shape: f32[8,256], index: 4, kind: output, shape index: {}]
  %s5 = sld [smem:[#allocation0]]
  $region34: #{tpu_custom_call.1} parent=0
    _
  %s7 = ssub.s32 1, %s5
  %s8 = scalar_select 0, %s7, %s5
  $region1: #{tpu_custom_call.1} parent=0
    #allocation2 [shape = 'u8[65536]{0}', space=vmem, size = 0x10000, scoped, tag = 'input window, operand 1, single buffered']
    #allocation3 [shape = 's32[1]{0}', space=sflag, size = 0x4, scoped, tag = 'scoped memory for tpu_custom_call.1']
    #allocation4 [shape = 's32[1]{0}', space=sflag, size = 0x4, scoped, tag = 'scoped memory for tpu_custom_call.1']
    #allocation5 [shape = 'u8[262144]{0}', space=vmem, size = 0x40000, scoped, tag = 'input window, operand 2, single buffered']
    #allocation6 [shape = 's32[1]{0}', space=sflag, size = 0x4, scoped, tag = 'scoped memory for tpu_custom_call.1']
    #allocation7 [shape = 'u8[8192]{0}', space=vmem, size = 0x2000, scoped, tag = 'output window, operand 0, single buffered']
    %9 = vsyncpa [#allocation3], 0
    %10 = vsyncpa [#allocation6], 0
    %11 = vsyncpa [#allocation4], 0
    // Predicated region
    $region2: #{tpu_custom_call.1} parent=1 // pred_check
      _
    $region3: #{tpu_custom_call.1} parent=1 // pred_check_branch
      %13 = sbr.rel (0) target = $region5
    $region4: #{tpu_custom_call.1} parent=1 // pred_region
      _
    $region5: #{tpu_custom_call.1} parent=1 // pred_fallthru
      _
    // Predicated region
    $region6: #{tpu_custom_call.1} parent=1 // pred_check
      _
    $region7: #{tpu_custom_call.1} parent=1 // pred_check_branch
      %15 = sbr.rel (0) target = $region9
    $region8: #{tpu_custom_call.1} parent=1 // pred_region
      %17 = vsyncadd [#allocation3], 0
      %s18 = sshll.u32 %s1, 4
      %s19 = int_to_ptr.hbm [resolvable:$true] %s18
      %s20 = sshll.u32 [#allocation2], 4
      %s21 = int_to_ptr.vmem [resolvable:$true] %s20
      %26 = dma.hbm_to_vmem [thread:$0]  %s19, 2048, %s21, [#allocation3], 256, 256, 16
    $region9: #{tpu_custom_call.1} parent=1 // pred_fallthru
      _
    // Predicated region
    $region10: #{tpu_custom_call.1} parent=1 // pred_check
      _
    $region11: #{tpu_custom_call.1} parent=1 // pred_check_branch
      %28 = sbr.rel (0) target = $region13
    $region12: #{tpu_custom_call.1} parent=1 // pred_region
      %30 = vsyncadd [#allocation6], 0
      %s31 = sshll.u32 %s2, 4
      %s32 = int_to_ptr.hbm [resolvable:$true] %s31
      %s33 = sshll.u32 [#allocation5], 4
      %s34 = int_to_ptr.vmem [resolvable:$true] %s33
      %39 = dma.hbm_to_vmem [thread:$0]  %s32, 8192, %s34, [#allocation6], 256, 256, 16
    $region13: #{tpu_custom_call.1} parent=1 // pred_fallthru
      _
    // Predicated region
    $region14: #{tpu_custom_call.1} parent=1 // pred_check
      _
    $region15: #{tpu_custom_call.1} parent=1 // pred_check_branch
      %41 = sbr.rel (0) target = $region17
    $region16: #{tpu_custom_call.1} parent=1 // pred_region
      _
    $region17: #{tpu_custom_call.1} parent=1 // pred_fallthru
      _
    // Predicated region
    $region18: #{tpu_custom_call.1} parent=1 // pred_check
      _
    $region19: #{tpu_custom_call.1} parent=1 // pred_check_branch
      %43 = sbr.rel (0) target = $region21
    $region20: #{tpu_custom_call.1} parent=1 // pred_region
      %45 = dma.done [#allocation3], 2048
    $region21: #{tpu_custom_call.1} parent=1 // pred_fallthru
      _
    // Predicated region
    $region22: #{tpu_custom_call.1} parent=1 // pred_check
      _
    $region23: #{tpu_custom_call.1} parent=1 // pred_check_branch
      %47 = sbr.rel (0) target = $region25
    $region24: #{tpu_custom_call.1} parent=1 // pred_region
      %49 = dma.done [#allocation6], 8192
    $region25: #{tpu_custom_call.1} parent=1 // pred_fallthru
      _
    %v50 = vlaneseq
    %v51 = vand.u32 %v50, 127
    %v52 = vld [vmem:[%s0] sm:$0xff]
    %53 = vset.pattern.permute.xlu0 0
    %54 = vperm.xlu0 %53, %v52
    %v55 = vpop.permute.xlu0 %54
    %vm56 = vcmp.eq.s32.totalorder %v55, %v51
    %v57 = vsel %vm56, 1, 0
    %v58 = vcvt.s32.f32 %v57
    %v59 = vld [vmem:[#allocation2] sm:$0xff]
    %v60 = vld [vmem:[#allocation2 + $0x8] sm:$0xff]
    %v61 = vld [vmem:[#allocation2 + $0x10] sm:$0xff]
    %v62 = vld [vmem:[#allocation2 + $0x18] sm:$0xff]
    %v63 = vld [vmem:[#allocation2 + $0x20] sm:$0xff]
    %v64 = vld [vmem:[#allocation2 + $0x28] sm:$0xff]
    %v65 = vld [vmem:[#allocation2 + $0x30] sm:$0xff]
    %v66 = vld [vmem:[#allocation2 + $0x38] sm:$0xff]
    %v67 = vld [vmem:[#allocation2 + $0x40] sm:$0xff]
    %v68 = vld [vmem:[#allocation2 + $0x48] sm:$0xff]
    %v69 = vld [vmem:[#allocation2 + $0x50] sm:$0xff]
    %v70 = vld [vmem:[#allocation2 + $0x58] sm:$0xff]
    %v71 = vld [vmem:[#allocation2 + $0x60] sm:$0xff]
    %v72 = vld [vmem:[#allocation2 + $0x68] sm:$0xff]
    %v73 = vld [vmem:[#allocation2 + $0x70] sm:$0xff]
    %v74 = vld [vmem:[#allocation2 + $0x78] sm:$0xff]
    %vm75 = vcmask 523264
    %v77 = vsel %vm75, %v58, 0
    %79 = vmatpush.msra.mxu0 0.0
    %80 = vmatpush.msra.mxu0 0.0
    %81 = vmatpush.msra.mxu0 0.0
    %82 = vmatpush.msra.mxu0 0.0
    %83 = vmatpush.msra.mxu0 0.0
    %84 = vmatpush.msra.mxu0 0.0
    %85 = vmatpush.msra.mxu0 0.0
    %86 = vmatpush.msra.mxu0 0.0
    %87 = vmatpush.msra.mxu0 %v73
    %88 = vmatpush.msra.mxu0 %v71
    %89 = vmatpush.msra.mxu0 %v69
    %90 = vmatpush.msra.mxu0 %v67
    %91 = vmatpush.msra.mxu0 %v65
    %92 = vmatpush.msra.mxu0 %v63
    %93 = vmatpush.msra.mxu0 %v61
    %94 = vmatpush.msra.mxu0 %v59
    %95 = vmatmul.f32.gmra.mxu0 %v77
    %v96 = vpop.f32.mrf.mxu0
    %v97 = vadd.f32 0.0, %v96
    %98 = vdwg.mxu0
    %99 = vmatpush.msra.mxu0 0.0
    %100 = vmatpush.msra.mxu0 0.0
    %101 = vmatpush.msra.mxu0 0.0
    %102 = vmatpush.msra.mxu0 0.0
    %103 = vmatpush.msra.mxu0 0.0
    %104 = vmatpush.msra.mxu0 0.0
    %105 = vmatpush.msra.mxu0 0.0
    %106 = vmatpush.msra.mxu0 0.0
    %107 = vmatpush.msra.mxu0 %v74
    %108 = vmatpush.msra.mxu0 %v72
    %109 = vmatpush.msra.mxu0 %v70
    %110 = vmatpush.msra.mxu0 %v68
    %111 = vmatpush.msra.mxu0 %v66
    %112 = vmatpush.msra.mxu0 %v64
    %113 = vmatpush.msra.mxu0 %v62
    %114 = vmatpush.msra.mxu0 %v60
    %115 = vmatmul.f32.gmra.mxu0 %v77
    %v116 = vpop.f32.mrf.mxu0
    %v117 = vadd.f32 0.0, %v116
    %118 = vdwg.mxu0
    %v119 = vld [vmem:[#allocation5] sm:$0xff]
    %v120 = vld [vmem:[#allocation5 + $0x8] sm:$0xff]
    %v121 = vld [vmem:[#allocation5 + $0x10] sm:$0xff]
    %v122 = vld [vmem:[#allocation5 + $0x18] sm:$0xff]
    %v123 = vld [vmem:[#allocation5 + $0x20] sm:$0xff]
    %v124 = vld [vmem:[#allocation5 + $0x28] sm:$0xff]
    %v125 = vld [vmem:[#allocation5 + $0x30] sm:$0xff]
    %v126 = vld [vmem:[#allocation5 + $0x38] sm:$0xff]
    %v127 = vld [vmem:[#allocation5 + $0x40] sm:$0xff]
    %v128 = vld [vmem:[#allocation5 + $0x48] sm:$0xff]
    %v129 = vld [vmem:[#allocation5 + $0x50] sm:$0xff]
    %v130 = vld [vmem:[#allocation5 + $0x58] sm:$0xff]
    %v131 = vld [vmem:[#allocation5 + $0x60] sm:$0xff]
    %v132 = vld [vmem:[#allocation5 + $0x68] sm:$0xff]
    %v133 = vld [vmem:[#allocation5 + $0x70] sm:$0xff]
    %v134 = vld [vmem:[#allocation5 + $0x78] sm:$0xff]
    %v135 = vld [vmem:[#allocation5 + $0x80] sm:$0xff]
    %v136 = vld [vmem:[#allocation5 + $0x88] sm:$0xff]
    %v137 = vld [vmem:[#allocation5 + $0x90] sm:$0xff]
    %v138 = vld [vmem:[#allocation5 + $0x98] sm:$0xff]
    %v139 = vld [vmem:[#allocation5 + $0xa0] sm:$0xff]
    %v140 = vld [vmem:[#allocation5 + $0xa8] sm:$0xff]
    %v141 = vld [vmem:[#allocation5 + $0xb0] sm:$0xff]
    %v142 = vld [vmem:[#allocation5 + $0xb8] sm:$0xff]
    %v143 = vld [vmem:[#allocation5 + $0xc0] sm:$0xff]
    %v144 = vld [vmem:[#allocation5 + $0xc8] sm:$0xff]
    %v145 = vld [vmem:[#allocation5 + $0xd0] sm:$0xff]
    %v146 = vld [vmem:[#allocation5 + $0xd8] sm:$0xff]
    %v147 = vld [vmem:[#allocation5 + $0xe0] sm:$0xff]
    %v148 = vld [vmem:[#allocation5 + $0xe8] sm:$0xff]
    %v149 = vld [vmem:[#allocation5 + $0xf0] sm:$0xff]
    %v150 = vld [vmem:[#allocation5 + $0xf8] sm:$0xff]
    %v151 = vld [vmem:[#allocation5 + $0x100] sm:$0xff]
    %v152 = vld [vmem:[#allocation5 + $0x108] sm:$0xff]
    %v153 = vld [vmem:[#allocation5 + $0x110] sm:$0xff]
    %v154 = vld [vmem:[#allocation5 + $0x118] sm:$0xff]
    %v155 = vld [vmem:[#allocation5 + $0x120] sm:$0xff]
    %v156 = vld [vmem:[#allocation5 + $0x128] sm:$0xff]
    %v157 = vld [vmem:[#allocation5 + $0x130] sm:$0xff]
    %v158 = vld [vmem:[#allocation5 + $0x138] sm:$0xff]
    %v159 = vld [vmem:[#allocation5 + $0x140] sm:$0xff]
    %v160 = vld [vmem:[#allocation5 + $0x148] sm:$0xff]
    %v161 = vld [vmem:[#allocation5 + $0x150] sm:$0xff]
    %v162 = vld [vmem:[#allocation5 + $0x158] sm:$0xff]
    %v163 = vld [vmem:[#allocation5 + $0x160] sm:$0xff]
    %v164 = vld [vmem:[#allocation5 + $0x168] sm:$0xff]
    %v165 = vld [vmem:[#allocation5 + $0x170] sm:$0xff]
    %v166 = vld [vmem:[#allocation5 + $0x178] sm:$0xff]
    %v167 = vld [vmem:[#allocation5 + $0x180] sm:$0xff]
    %v168 = vld [vmem:[#allocation5 + $0x188] sm:$0xff]
    %v169 = vld [vmem:[#allocation5 + $0x190] sm:$0xff]
    %v170 = vld [vmem:[#allocation5 + $0x198] sm:$0xff]
    %v171 = vld [vmem:[#allocation5 + $0x1a0] sm:$0xff]
    %v172 = vld [vmem:[#allocation5 + $0x1a8] sm:$0xff]
    %v173 = vld [vmem:[#allocation5 + $0x1b0] sm:$0xff]
    %v174 = vld [vmem:[#allocation5 + $0x1b8] sm:$0xff]
    %v175 = vld [vmem:[#allocation5 + $0x1c0] sm:$0xff]
    %v176 = vld [vmem:[#allocation5 + $0x1c8] sm:$0xff]
    %v177 = vld [vmem:[#allocation5 + $0x1d0] sm:$0xff]
    %v178 = vld [vmem:[#allocation5 + $0x1d8] sm:$0xff]
    %v179 = vld [vmem:[#allocation5 + $0x1e0] sm:$0xff]
    %v180 = vld [vmem:[#allocation5 + $0x1e8] sm:$0xff]
    %v181 = vld [vmem:[#allocation5 + $0x1f0] sm:$0xff]
    %v182 = vld [vmem:[#allocation5 + $0x1f8] sm:$0xff]
    %v183 = vld [vmem:[%s3] sm:$0x3]
    %v185 = vperm.slane %v183, 0
    %v186 = vperm.slane %v183, 1
    %189 = vmatpush.msra.mxu0 %v149
    %190 = vmatpush.msra.mxu0 %v147
    %191 = vmatpush.msra.mxu0 %v145
    %192 = vmatpush.msra.mxu0 %v143
    %193 = vmatpush.msra.mxu0 %v141
    %194 = vmatpush.msra.mxu0 %v139
    %195 = vmatpush.msra.mxu0 %v137
    %196 = vmatpush.msra.mxu0 %v135
    %197 = vmatpush.msra.mxu0 %v133
    %198 = vmatpush.msra.mxu0 %v131
    %199 = vmatpush.msra.mxu0 %v129
    %200 = vmatpush.msra.mxu0 %v127
    %201 = vmatpush.msra.mxu0 %v125
    %202 = vmatpush.msra.mxu0 %v123
    %203 = vmatpush.msra.mxu0 %v121
    %204 = vmatpush.msra.mxu0 %v119
    %205 = vmatmul.f32.gmra.mxu0 %v97
    %v206 = vpop.f32.mrf.mxu0
    %v207 = vadd.f32 %v185, %v206
    %208 = vdwg.mxu0
    %209 = vmatpush.msra.mxu0 %v181
    %210 = vmatpush.msra.mxu0 %v179
    %211 = vmatpush.msra.mxu0 %v177
    %212 = vmatpush.msra.mxu0 %v175
    %213 = vmatpush.msra.mxu0 %v173
    %214 = vmatpush.msra.mxu0 %v171
    %215 = vmatpush.msra.mxu0 %v169
    %216 = vmatpush.msra.mxu0 %v167
    %217 = vmatpush.msra.mxu0 %v165
    %218 = vmatpush.msra.mxu0 %v163
    %219 = vmatpush.msra.mxu0 %v161
    %220 = vmatpush.msra.mxu0 %v159
    %221 = vmatpush.msra.mxu0 %v157
    %222 = vmatpush.msra.mxu0 %v155
    %223 = vmatpush.msra.mxu0 %v153
    %224 = vmatpush.msra.mxu0 %v151
    %225 = vmatmul.f32.gmra.mxu0 %v117
    %v226 = vpop.f32.mrf.mxu0
    %v227 = vadd.f32 %v207, %v226
    %228 = vdwg.mxu0
    %229 = vmatpush.msra.mxu0 %v150
    %230 = vmatpush.msra.mxu0 %v148
    %231 = vmatpush.msra.mxu0 %v146
    %232 = vmatpush.msra.mxu0 %v144
    %233 = vmatpush.msra.mxu0 %v142
    %234 = vmatpush.msra.mxu0 %v140
    %235 = vmatpush.msra.mxu0 %v138
    %236 = vmatpush.msra.mxu0 %v136
    %237 = vmatpush.msra.mxu0 %v134
    %238 = vmatpush.msra.mxu0 %v132
    %239 = vmatpush.msra.mxu0 %v130
    %240 = vmatpush.msra.mxu0 %v128
    %241 = vmatpush.msra.mxu0 %v126
    %242 = vmatpush.msra.mxu0 %v124
    %243 = vmatpush.msra.mxu0 %v122
    %244 = vmatpush.msra.mxu0 %v120
    %245 = vmatmul.f32.gmra.mxu0 %v97
    %v246 = vpop.f32.mrf.mxu0
    %v247 = vadd.f32 %v186, %v246
    %248 = vdwg.mxu0
    %249 = vmatpush.msra.mxu0 %v182
    %250 = vmatpush.msra.mxu0 %v180
    %251 = vmatpush.msra.mxu0 %v178
    %252 = vmatpush.msra.mxu0 %v176
    %253 = vmatpush.msra.mxu0 %v174
    %254 = vmatpush.msra.mxu0 %v172
    %255 = vmatpush.msra.mxu0 %v170
    %256 = vmatpush.msra.mxu0 %v168
    %257 = vmatpush.msra.mxu0 %v166
    %258 = vmatpush.msra.mxu0 %v164
    %259 = vmatpush.msra.mxu0 %v162
    %260 = vmatpush.msra.mxu0 %v160
    %261 = vmatpush.msra.mxu0 %v158
    %262 = vmatpush.msra.mxu0 %v156
    %263 = vmatpush.msra.mxu0 %v154
    %264 = vmatpush.msra.mxu0 %v152
    %265 = vmatmul.f32.gmra.mxu0 %v117
    %v266 = vpop.f32.mrf.mxu0
    %v267 = vadd.f32 %v247, %v266
    %268 = vdwg.mxu0
    %v269 = vxor.u32 %v227, 2147483648
    %v270 = vxor.u32 %v267, 2147483648
    %v271 = vmul.f32 %v269, 1.442695
    %v272 = vpow.pop %v271
    %v273 = vmul.f32 %v270, 1.442695
    %v274 = vpow.pop %v273
    %v275 = vadd.f32 %v272, 1.0
    %v276 = vadd.f32 %v274, 1.0
    %v277 = vrcp.pop %v275
    %v278 = vmul.f32 %v275, %v277
    %v279 = vsub.f32 1.0, %v278
    %v280 = vmul.f32 %v277, %v279
    %v281 = vadd.f32 %v277, %v280
    %vm282 = vweird.f32 %v275
    %vm283 = vweird.f32 %v277
    %vm284 = vmor %vm282, %vm283
    %v285 = vsel %vm284, %v277, %v281
    %v286 = vand.u32 2147483647, %v275
    %vm287 = vcmp.eq.f32.partialorder %v286, 8.507059e+37
    %v288 = vand.u32 %v275, 2147483648
    %v289 = vor.u32 1.1754944e-38, %v288
    %v290 = vsel %vm287, %v289, %v285
    %v291 = vmul.f32 1.0, %v290
    %v292 = vrcp.pop %v276
    %v293 = vmul.f32 %v276, %v292
    %v294 = vsub.f32 1.0, %v293
    %v295 = vmul.f32 %v292, %v294
    %v296 = vadd.f32 %v292, %v295
    %vm297 = vweird.f32 %v276
    %vm298 = vweird.f32 %v292
    %vm299 = vmor %vm297, %vm298
    %v300 = vsel %vm299, %v292, %v296
    %v301 = vand.u32 2147483647, %v276
    %vm302 = vcmp.eq.f32.partialorder %v301, 8.507059e+37
    %v303 = vand.u32 %v276, 2147483648
    %v304 = vor.u32 1.1754944e-38, %v303
    %v305 = vsel %vm302, %v304, %v300
    %v306 = vmul.f32 1.0, %v305
    %v307 = vmul.f32 %v227, %v291
    %v308 = vmul.f32 %v267, %v306
    %309 = vst [vmem:[#allocation7] sm:$0xff] %v307
    %310 = vst [vmem:[#allocation7 + $0x8] sm:$0xff] %v308
    // Predicated region
    $region26: #{tpu_custom_call.1} parent=1 // pred_check
      _
    $region27: #{tpu_custom_call.1} parent=1 // pred_check_branch
      %312 = sbr.rel (0) target = $region29
    $region28: #{tpu_custom_call.1} parent=1 // pred_region
      %314 = vsyncadd [#allocation4], 0
      %s316 = sshll.u32 [#allocation7], 4
      %s317 = int_to_ptr.vmem [resolvable:$true] %s316
      %s318 = sshll.u32 %s4, 4
      %s319 = int_to_ptr.hbm [resolvable:$true] %s318
      %321 = dma.vmem_to_hbm [thread:$0]  %s317, 256, %s319, [#allocation4]
    $region29: #{tpu_custom_call.1} parent=1 // pred_fallthru
      _
    // Predicated region
    $region30: #{tpu_custom_call.1} parent=1 // pred_check
      _
    $region31: #{tpu_custom_call.1} parent=1 // pred_check_branch
      %323 = sbr.rel (0) target = $region33
    $region32: #{tpu_custom_call.1} parent=1 // pred_region
      %325 = dma.done [#allocation4], 256
    $region33: #{tpu_custom_call.1} parent=1 // pred_fallthru
      _
    %326 = vsyncpa [#allocation3], 1
    %327 = vsyncpa [#allocation6], 1
    %328 = vsyncpa [#allocation4], 1

</llo_original>
